<compile_context>
chip_gen: v7x
topology: tpu7x:2x2x1
jax: 0.10.0
libtpu: 0.0.40
codegen_flags: <defaults>
</compile_context>

<pallas_src>
import functools

import jax
import jax.numpy as jnp
from jax import lax
from jax.experimental import pallas as pl
from jax.experimental.pallas import tpu as pltpu

_LANE = 128
_MASK = -1e30  # finite "minus infinity" for padded action logits


def _actor_kernel(x_ref, w1_ref, b1_ref, w2_ref, b2_ref, w3_ref, b3_ref,
                  pi_ref, *, n_actions):
    """Fused MLP tile: two tanh-Linears, a logits Linear, and a row softmax."""
    x = x_ref[...]  # (TM, in_p) bf16

    # fc1 + tanh   (bf16 MXU operands, f32 accumulate, f32 elementwise)
    h1 = jnp.tanh(
        jnp.dot(x, w1_ref[...], preferred_element_type=jnp.float32) + b1_ref[...]
    )
    # fc2 + tanh
    h2 = jnp.tanh(
        jnp.dot(h1.astype(jnp.bfloat16), w2_ref[...],
                preferred_element_type=jnp.float32) + b2_ref[...]
    )
    # pi head: logits over the lane-padded action axis.
    logits = (
        jnp.dot(h2.astype(jnp.bfloat16), w3_ref[...],
                preferred_element_type=jnp.float32) + b3_ref[...]
    )

    # Numerically stable softmax over the *real* action columns only.
    # Padded columns (zero weight / zero bias) are masked out of the max and
    # forced to exactly 0 after exp, so they never touch the denominator and
    # the stored slab carries exact zeros there.
    valid = lax.broadcasted_iota(jnp.int32, logits.shape, 1) < n_actions
    masked = jnp.where(valid, logits, jnp.float32(_MASK))
    m = jnp.max(masked, axis=-1, keepdims=True)
    e = jnp.where(valid, jnp.exp(masked - m), 0.0)
    denom = jnp.sum(e, axis=-1, keepdims=True)
    pi_ref[...] = (e / denom).astype(pi_ref.dtype)  # exact normalization


def _pad_to(a, axis, multiple, value=0.0):
    size = a.shape[axis]
    target = pl.cdiv(size, multiple) * multiple
    if target == size:
        return a
    pads = [(0, 0)] * a.ndim
    pads[axis] = (0, target - size)
    return jnp.pad(a, pads, constant_values=value)


def _choose_tm(batch, requested):
    """Batch tile: large enough to amortize ~0.35us/grid-step overhead, but keep
    >= 2 grid steps when the batch allows so dimension_semantics=("parallel",)
    can shard across the two TensorCores on v7x."""
    if requested is not None:
        return requested
    b128 = pl.cdiv(batch, _LANE) * _LANE
    if b128 <= 2 * _LANE:
        return min(b128, _LANE)
    half = (b128 // 2) // _LANE * _LANE
    return max(_LANE, min(2048, half))


@functools.partial(jax.jit, static_argnames=("tm",))
def discrete_actor_probs_padded(state, w1, b1, w2, b2, w3, b3, *, tm=None):
    """Fused actor MLP.  Returns the lane-padded probability slab.

    Shape: (batch_p, n_pad) float32 with batch_p = ceil(batch/tile)*tile and
    n_pad = ceil(n_actions/128)*128.  slab[:batch, :n_actions] holds the
    Categorical probabilities; padded action columns are exactly 0, so a
    downstream sampler can consume the slab directly (avoids a full extra
    HBM copy that a post-call slice would cost).
    """
    batch, _ = state.shape
    n_actions = w3.shape[1]
    tm = _choose_tm(batch, tm)

    # --- host-side layout prep (all static-shaped, fused by jit) -------------
    b1 = b1.reshape(1, -1)
    b2 = b2.reshape(1, -1)
    b3 = b3.reshape(1, -1)

    # Lane-dense x tile: pad K of fc1 (zeros in x columns and w1 rows).
    state = _pad_to(state, 1, _LANE)
    w1 = _pad_to(w1, 0, _LANE)
    # Hidden dims to lane multiples (tanh(0)=0 and zero rows in the next weight
    # keep the math exact).
    w1 = _pad_to(w1, 1, _LANE)
    b1 = _pad_to(b1, 1, _LANE)
    w2 = _pad_to(_pad_to(w2, 0, _LANE), 1, _LANE)
    b2 = _pad_to(b2, 1, _LANE)
    # Lane-dense output: pad n_actions (zero weight/bias; kernel masks them).
    w3 = _pad_to(_pad_to(w3, 0, _LANE), 1, _LANE)
    b3 = _pad_to(b3, 1, _LANE)
    # Batch up to a multiple of the tile.
    state = _pad_to(state, 0, tm)

    batch_p, in_p = state.shape
    fc1_p = w1.shape[1]
    fc2_p = w2.shape[1]
    n_pad = w3.shape[1]

    # bf16 operands for the MXU; biases stay f32 (added to the f32 accumulator).
    x_bf = state.astype(jnp.bfloat16)
    w1_bf = w1.astype(jnp.bfloat16)
    w2_bf = w2.astype(jnp.bfloat16)
    w3_bf = w3.astype(jnp.bfloat16)
    b1_f = b1.astype(jnp.float32)
    b2_f = b2.astype(jnp.float32)
    b3_f = b3.astype(jnp.float32)

    grid = (batch_p // tm,)

    # Weights/biases: constant index_map -> resident in VMEM across grid steps.
    resident = lambda a: pl.BlockSpec(a.shape, lambda i: (0,) * a.ndim)

    flops = 2 * batch_p * (in_p * fc1_p + fc1_p * fc2_p + fc2_p * n_pad)
    transcendentals = batch_p * (fc1_p + fc2_p + n_pad)  # tanh x2 + exp
    bytes_accessed = (
        x_bf.size * 2 + w1_bf.size * 2 + w2_bf.size * 2 + w3_bf.size * 2
        + (b1_f.size + b2_f.size + b3_f.size) * 4
        + batch_p * n_pad * 4
    )

    return pl.pallas_call(
        functools.partial(_actor_kernel, n_actions=n_actions),
        out_shape=jax.ShapeDtypeStruct((batch_p, n_pad), jnp.float32),
        grid=grid,
        in_specs=[
            pl.BlockSpec((tm, in_p), lambda i: (i, 0)),
            resident(w1_bf), resident(b1_f),
            resident(w2_bf), resident(b2_f),
            resident(w3_bf), resident(b3_f),
        ],
        out_specs=pl.BlockSpec((tm, n_pad), lambda i: (i, 0)),
        compiler_params=pltpu.CompilerParams(
            dimension_semantics=("parallel",),
        ),
        cost_estimate=pl.CostEstimate(
            flops=flops,
            transcendentals=transcendentals,
            bytes_accessed=bytes_accessed,
        ),
    )(x_bf, w1_bf, b1_f, w2_bf, b2_f, w3_bf, b3_f)


def discrete_actor_forward(state, w1, b1, w2, b2, w3, b3, *, tm=None):
    """Module-faithful API: (batch, n_actions) probabilities.

    Note: this forces a slice copy of the output slab; hot-path consumers
    should use discrete_actor_probs_padded and index lazily / fuse the slice
    into the sampling op.
    """
    batch = state.shape[0]
    n_actions = w3.shape[1]
    slab = discrete_actor_probs_padded(state, w1, b1, w2, b2, w3, b3, tm=tm)
    return slab[:batch, :n_actions]


def init_linear_params(key, fan_in, fan_out):
    """PyTorch-style nn.Linear init: U(-1/sqrt(fan_in), 1/sqrt(fan_in)).

    Weight returned as (fan_in, fan_out) so the kernel computes x @ W directly.
    """
    kw, kb = jax.random.split(key)
    bound = 1.0 / jnp.sqrt(jnp.float32(fan_in))
    w = jax.random.uniform(kw, (fan_in, fan_out), jnp.float32, -bound, bound)
    b = jax.random.uniform(kb, (1, fan_out), jnp.float32, -bound, bound)
    return w, b


if __name__ == "__main__":
    # Small shapes consistent with the module's forward (RL-style state dims,
    # lane-aligned hidden dims; batch spans two 128-row tiles -> grid=(2,)).
    batch = 256
    input_dims = 8
    fc1_dims = 128
    fc2_dims = 128
    n_actions = 6

    key = jax.random.PRNGKey(0)
    k_state, k1, k2, k3 = jax.random.split(key, 4)

    state = jax.random.normal(k_state, (batch, input_dims), jnp.float32)
    w1, b1 = init_linear_params(k1, input_dims, fc1_dims)
    w2, b2 = init_linear_params(k2, fc1_dims, fc2_dims)
    w3, b3 = init_linear_params(k3, fc2_dims, n_actions)

    pi_slab = discrete_actor_probs_padded(state, w1, b1, w2, b2, w3, b3)
    pi_slab = jax.block_until_ready(pi_slab)
    pi = pi_slab[:batch, :n_actions]  # consumer-side view of the real probabilities

    # Reference in plain JAX, mirroring the kernel's bf16-operand / f32-accumulate path.
    sb = state.astype(jnp.bfloat16)
    h1 = jnp.tanh(jnp.dot(sb, w1.astype(jnp.bfloat16),
                          preferred_element_type=jnp.float32) + b1)
    h2 = jnp.tanh(jnp.dot(h1.astype(jnp.bfloat16), w2.astype(jnp.bfloat16),
                          preferred_element_type=jnp.float32) + b2)
    logits = jnp.dot(h2.astype(jnp.bfloat16), w3.astype(jnp.bfloat16),
                     preferred_element_type=jnp.float32) + b3
    ref = jax.nn.softmax(logits, axis=1)

    assert pi.shape == (batch, n_actions)
    # Exact divide normalization -> rows sum to 1 at f32 rounding.
    assert jnp.allclose(jnp.sum(pi, axis=1), 1.0, atol=1e-4)
    # Padded action columns carry exact zeros.
    assert float(jnp.max(jnp.abs(pi_slab[:batch, n_actions:]))) == 0.0
    assert jnp.allclose(pi, ref, atol=2e-3, rtol=2e-3)

    # TODO(synk): torch.distributions.Categorical object construction has no Pallas
    # equivalent; the kernel returns the probability matrix `pi` (its sole parameter).
    print("KERNEL_OK")
</pallas_src>

<mosaic_0001>
module attributes {stable_mosaic.version = 11 : i64} {
  func.func @_actor_kernel(%arg0: i32, %arg1: memref<128x128xbf16, #tpu.memory_space<vmem>>, %arg2: memref<128x128xbf16, #tpu.memory_space<vmem>>, %arg3: memref<1x128xf32, #tpu.memory_space<vmem>>, %arg4: memref<128x128xbf16, #tpu.memory_space<vmem>>, %arg5: memref<1x128xf32, #tpu.memory_space<vmem>>, %arg6: memref<128x128xbf16, #tpu.memory_space<vmem>>, %arg7: memref<1x128xf32, #tpu.memory_space<vmem>>, %arg8: memref<128x128xf32, #tpu.memory_space<vmem>>) attributes {dimension_semantics = [#tpu.dimension_semantics<parallel>], iteration_bounds = array<i64: 2>, scalar_prefetch = 0 : i64, scratch_operands = 0 : i64, tpu.core_type = #tpu.core_type<tc>, window_params = [{transform_indices = @transform_0, window_bounds = array<i64: 128, 128>}, {pipeline_mode = #tpu.pipeline_mode<synchronous>, transform_indices = @transform_1, window_bounds = array<i64: 128, 128>}, {pipeline_mode = #tpu.pipeline_mode<synchronous>, transform_indices = @transform_2, window_bounds = array<i64: 1, 128>}, {pipeline_mode = #tpu.pipeline_mode<synchronous>, transform_indices = @transform_3, window_bounds = array<i64: 128, 128>}, {pipeline_mode = #tpu.pipeline_mode<synchronous>, transform_indices = @transform_4, window_bounds = array<i64: 1, 128>}, {pipeline_mode = #tpu.pipeline_mode<synchronous>, transform_indices = @transform_5, window_bounds = array<i64: 128, 128>}, {pipeline_mode = #tpu.pipeline_mode<synchronous>, transform_indices = @transform_6, window_bounds = array<i64: 1, 128>}, {transform_indices = @transform_7, window_bounds = array<i64: 128, 128>}]} {
    %c0 = arith.constant 0 : index
    %c0_0 = arith.constant 0 : index
    %0 = vector.load %arg1[%c0, %c0_0] : memref<128x128xbf16, #tpu.memory_space<vmem>>, vector<128x128xbf16>
    %c0_1 = arith.constant 0 : index
    %c0_2 = arith.constant 0 : index
    %1 = vector.load %arg2[%c0_1, %c0_2] : memref<128x128xbf16, #tpu.memory_space<vmem>>, vector<128x128xbf16>
    %cst = arith.constant dense<0.000000e+00> : vector<128x128xf32>
    %2 = tpu.matmul %0, %1, %cst {dimension_numbers = #tpu.dot_dimension_numbers<[1], [0], [0], [1], [0, 0, 1, 1], [], []>} : vector<128x128xbf16>, vector<128x128xbf16>, vector<128x128xf32> -> vector<128x128xf32>
    %c0_3 = arith.constant 0 : index
    %c0_4 = arith.constant 0 : index
    %3 = vector.load %arg3[%c0_3, %c0_4] : memref<1x128xf32, #tpu.memory_space<vmem>>, vector<1x128xf32>
    %4 = vector.broadcast %3 : vector<1x128xf32> to vector<128x128xf32>
    %5 = arith.addf %2, %4 : vector<128x128xf32>
    %6 = math.tanh %5 : vector<128x128xf32>
    %7 = arith.truncf %6 : vector<128x128xf32> to vector<128x128xbf16>
    %c0_5 = arith.constant 0 : index
    %c0_6 = arith.constant 0 : index
    %8 = vector.load %arg4[%c0_5, %c0_6] : memref<128x128xbf16, #tpu.memory_space<vmem>>, vector<128x128xbf16>
    %cst_7 = arith.constant dense<0.000000e+00> : vector<128x128xf32>
    %9 = tpu.matmul %7, %8, %cst_7 {dimension_numbers = #tpu.dot_dimension_numbers<[1], [0], [0], [1], [0, 0, 1, 1], [], []>} : vector<128x128xbf16>, vector<128x128xbf16>, vector<128x128xf32> -> vector<128x128xf32>
    %c0_8 = arith.constant 0 : index
    %c0_9 = arith.constant 0 : index
    %10 = vector.load %arg5[%c0_8, %c0_9] : memref<1x128xf32, #tpu.memory_space<vmem>>, vector<1x128xf32>
    %11 = vector.broadcast %10 : vector<1x128xf32> to vector<128x128xf32>
    %12 = arith.addf %9, %11 : vector<128x128xf32>
    %13 = math.tanh %12 : vector<128x128xf32>
    %14 = arith.truncf %13 : vector<128x128xf32> to vector<128x128xbf16>
    %c0_10 = arith.constant 0 : index
    %c0_11 = arith.constant 0 : index
    %15 = vector.load %arg6[%c0_10, %c0_11] : memref<128x128xbf16, #tpu.memory_space<vmem>>, vector<128x128xbf16>
    %cst_12 = arith.constant dense<0.000000e+00> : vector<128x128xf32>
    %16 = tpu.matmul %14, %15, %cst_12 {dimension_numbers = #tpu.dot_dimension_numbers<[1], [0], [0], [1], [0, 0, 1, 1], [], []>} : vector<128x128xbf16>, vector<128x128xbf16>, vector<128x128xf32> -> vector<128x128xf32>
    %c0_13 = arith.constant 0 : index
    %c0_14 = arith.constant 0 : index
    %17 = vector.load %arg7[%c0_13, %c0_14] : memref<1x128xf32, #tpu.memory_space<vmem>>, vector<1x128xf32>
    %18 = vector.broadcast %17 : vector<1x128xf32> to vector<128x128xf32>
    %19 = arith.addf %16, %18 : vector<128x128xf32>
    %20 = tpu.iota {dimensions = array<i32: 1>} : vector<128x128xi32>
    %c6_i32 = arith.constant 6 : i32
    %21 = vector.broadcast %c6_i32 : i32 to vector<128x128xi32>
    %22 = arith.cmpi slt, %20, %21 : vector<128x128xi32>
    %cst_15 = arith.constant -1.000000e+30 : f32
    %23 = vector.broadcast %cst_15 : f32 to vector<128x128xf32>
    %24 = arith.select %22, %19, %23 : vector<128x128xi1>, vector<128x128xf32>
    %cst_16 = arith.constant dense<0xFF800000> : vector<128xf32>
    %25 = vector.multi_reduction <maximumf>, %24, %cst_16 [1] : vector<128x128xf32> to vector<128xf32>
    %26 = vector.shape_cast %25 : vector<128xf32> to vector<128x1xf32>
    %27 = vector.broadcast %26 : vector<128x1xf32> to vector<128x128xf32>
    %28 = arith.subf %24, %27 : vector<128x128xf32>
    %29 = math.exp %28 : vector<128x128xf32>
    %cst_17 = arith.constant 0.000000e+00 : f32
    %30 = vector.broadcast %cst_17 : f32 to vector<128x128xf32>
    %31 = arith.select %22, %29, %30 : vector<128x128xi1>, vector<128x128xf32>
    %cst_18 = arith.constant dense<0.000000e+00> : vector<128xf32>
    %32 = vector.multi_reduction <add>, %31, %cst_18 [1] : vector<128x128xf32> to vector<128xf32>
    %33 = vector.shape_cast %32 : vector<128xf32> to vector<128x1xf32>
    %34 = vector.broadcast %33 : vector<128x1xf32> to vector<128x128xf32>
    %35 = arith.divf %31, %34 : vector<128x128xf32>
    %c0_19 = arith.constant 0 : index
    %c0_20 = arith.constant 0 : index
    %36 = vector.load %arg8[%c0_19, %c0_20] : memref<128x128xf32, #tpu.memory_space<vmem>>, vector<128x128xf32>
    tpu.vector_store %arg8[%c0_19, %c0_20], %35 {strides = array<i32>} : memref<128x128xf32, #tpu.memory_space<vmem>>, vector<128x128xf32>,
    return
  }
  func.func @transform_0(%arg0: i32) -> (i32, i32) {
    %c0_i32 = arith.constant 0 : i32
    %c0_i32_0 = arith.constant 0 : i32
    return %arg0, %c0_i32 : i32, i32
  }
  func.func @transform_1(%arg0: i32) -> (i32, i32) {
    %c0_i32 = arith.constant 0 : i32
    %c0_i32_0 = arith.constant 0 : i32
    %c0_i32_1 = arith.constant 0 : i32
    return %c0_i32, %c0_i32_0 : i32, i32
  }
  func.func @transform_2(%arg0: i32) -> (i32, i32) {
    %c0_i32 = arith.constant 0 : i32
    %c0_i32_0 = arith.constant 0 : i32
    %c0_i32_1 = arith.constant 0 : i32
    return %c0_i32, %c0_i32_0 : i32, i32
  }
  func.func @transform_3(%arg0: i32) -> (i32, i32) {
    %c0_i32 = arith.constant 0 : i32
    %c0_i32_0 = arith.constant 0 : i32
    %c0_i32_1 = arith.constant 0 : i32
    return %c0_i32, %c0_i32_0 : i32, i32
  }
  func.func @transform_4(%arg0: i32) -> (i32, i32) {
    %c0_i32 = arith.constant 0 : i32
    %c0_i32_0 = arith.constant 0 : i32
    %c0_i32_1 = arith.constant 0 : i32
    return %c0_i32, %c0_i32_0 : i32, i32
  }
  func.func @transform_5(%arg0: i32) -> (i32, i32) {
    %c0_i32 = arith.constant 0 : i32
    %c0_i32_0 = arith.constant 0 : i32
    %c0_i32_1 = arith.constant 0 : i32
    return %c0_i32, %c0_i32_0 : i32, i32
  }
  func.func @transform_6(%arg0: i32) -> (i32, i32) {
    %c0_i32 = arith.constant 0 : i32
    %c0_i32_0 = arith.constant 0 : i32
    %c0_i32_1 = arith.constant 0 : i32
    return %c0_i32, %c0_i32_0 : i32, i32
  }
  func.func @transform_7(%arg0: i32) -> (i32, i32) {
    %c0_i32 = arith.constant 0 : i32
    %c0_i32_0 = arith.constant 0 : i32
    return %arg0, %c0_i32 : i32, i32
  }
}

</mosaic_0001>

<llo_original>
// kernel: discrete_actor_probs_padded.1
$region0: #{discrete_actor_probs_padded.1}
  #allocation0 [shape = 'u32[]', space=smem, size = 0x4, offset = 0x4, fixed_abs, tag = 'smem constant byte address 0x4 - core index']
  #allocation1 [shape = 'u32[144,128]{1,0:T(1,128)}', space=vmem, size = 0x12000, scoped, tag = 'internal scratch']
  %s0 = inlined_call_operand.vmem [shape: bf16[256,128], index: 0, kind: input, shape index: {}]
  %s1 = inlined_call_operand.vmem [shape: bf16[128,128], index: 1, kind: input, shape index: {}]
  %s2 = inlined_call_operand.vmem [shape: f32[1,128], index: 2, kind: input, shape index: {}]
  %s3 = inlined_call_operand.vmem [shape: bf16[128,128], index: 3, kind: input, shape index: {}]
  %s4 = inlined_call_operand.vmem [shape: f32[1,128], index: 4, kind: input, shape index: {}]
  %s5 = inlined_call_operand.vmem [shape: bf16[128,128], index: 5, kind: input, shape index: {}]
  %s6 = inlined_call_operand.vmem [shape: f32[1,128], index: 6, kind: input, shape index: {}]
  %s7 = inlined_call_operand.hbm [shape: f32[256,128], index: 7, kind: output, shape index: {}]
  %s8 = sld [smem:[#allocation0]]
  $region61: #{discrete_actor_probs_padded.1} parent=0
    _
  %s10 = ssub.s32 1, %s8
  %s11 = scalar_select 0, %s10, %s8
  $region1: #{discrete_actor_probs_padded.1} parent=0
    #allocation2 [shape = 'u8[131072]{0}', space=vmem, size = 0x20000, scoped, tag = 'output window, operand 0']
    #allocation3 [shape = 's32[2]{0}', space=sflag, size = 0x8, scoped, tag = 'scoped memory for discrete_actor_probs_padded.1']
    %12 = vsyncpa [#allocation3], 0
    %s13 = scalar_lea.sflag [#allocation3], 1
    %14 = vsyncpa %s13, 0
    loop: start=0, step=1, limit=4
    $region2: #{discrete_actor_probs_padded.1} parent=1 // loop_pre_header
      _
    $region3: #{discrete_actor_probs_padded.1} parent=1 // loop_header
      %s16 = sphi 0, %s20
      %p17 = scmp.ge.s32.totalorder %s16, 4
      %s26 = sphi 0, %s28
      %s29 = sphi 0, %s26
      %s30 = sphi 0, %s29
      %s46 = sphi 0, %s30
      %s50 = sphi 0, %s50
      %s52 = sphi 0, %s50
      %s53 = sphi 0, %s52
      %s67 = sphi 0, %s53
      %s71 = sphi 0, %s71
      %s73 = sphi 0, %s71
      %s74 = sphi 0, %s73
      %s88 = sphi 0, %s74
      %s92 = sphi 0, %s92
      %s94 = sphi 0, %s92
      %s95 = sphi 0, %s94
      %s109 = sphi 0, %s95
      %s113 = sphi 0, %s113
      %s115 = sphi 0, %s113
      %s116 = sphi 0, %s115
      %s130 = sphi 0, %s116
      %s134 = sphi 0, %s134
      %s136 = sphi 0, %s134
      %s137 = sphi 0, %s136
      %s151 = sphi 0, %s137
      %s155 = sphi 0, %s155
      %s157 = sphi 0, %s155
      %s158 = sphi 0, %s157
      %s172 = sphi 0, %s158
      %s178 = sphi 0, %s180
      %s181 = sphi 0, %s178
      %s182 = sphi 0, %s181
      %s198 = sphi 0, %s182
    $region4: #{discrete_actor_probs_padded.1} parent=1 // loop_header_branch
      %19 = sbr.rel (%p17) target = $region8
    $region5: #{discrete_actor_probs_padded.1} parent=1 // loop_body
      %s21 = ssub.s32 %s16, 1
      %s22 = ssub.s32 %s16, 2
      %s23 = sadd.s32 %s16, 1
      %s24 = ssub.s32 %s16, %s23
      %p25 = scmp.eq.s32.totalorder %s24, 0
      %s27 = sadd.s32 %s26, 1
      %s28 = scalar_select %p25, %s26, %s27
      %p31 = pneg %p25
      %p32 = scmp.eq.s32.totalorder %s16, 1
      %p33 = por %p31, %p32
      %p34 = scmp.ne.s32.totalorder %s26, %s29
      %p35 = scmp.eq.s32.totalorder %s16, 0
      %p36 = por %p34, %p35
      %p37 = scmp.ne.s32.totalorder %s26, %s29
      %p38 = scmp.eq.s32.totalorder %s21, 1
      %p39 = por %p37, %p38
      %p40 = scmp.ne.s32.totalorder %s29, %s30
      %p41 = scmp.eq.s32.totalorder %s21, 0
      %p42 = por %p40, %p41
      %p43 = scmp.ne.s32.totalorder %s29, %s30
      %p44 = scmp.eq.s32.totalorder %s22, 1
      %p45 = por %p43, %p44
      %p47 = scmp.ne.s32.totalorder %s30, %s46
      %p48 = scmp.eq.s32.totalorder %s22, 0
      %p49 = por %p47, %p48
      %s51 = sadd.s32 %s50, 1
      %p54 = scmp.eq.s32.totalorder %s16, 1
      %p55 = scmp.ne.s32.totalorder %s50, %s52
      %p56 = scmp.eq.s32.totalorder %s16, 0
      %p57 = por %p55, %p56
      %p58 = scmp.ne.s32.totalorder %s50, %s52
      %p59 = scmp.eq.s32.totalorder %s21, 1
      %p60 = por %p58, %p59
      %p61 = scmp.ne.s32.totalorder %s52, %s53
      %p62 = scmp.eq.s32.totalorder %s21, 0
      %p63 = por %p61, %p62
      %p64 = scmp.ne.s32.totalorder %s52, %s53
      %p65 = scmp.eq.s32.totalorder %s22, 1
      %p66 = por %p64, %p65
      %p68 = scmp.ne.s32.totalorder %s53, %s67
      %p69 = scmp.eq.s32.totalorder %s22, 0
      %p70 = por %p68, %p69
      %s72 = sadd.s32 %s71, 1
      %p75 = scmp.eq.s32.totalorder %s16, 1
      %p76 = scmp.ne.s32.totalorder %s71, %s73
      %p77 = scmp.eq.s32.totalorder %s16, 0
      %p78 = por %p76, %p77
      %p79 = scmp.ne.s32.totalorder %s71, %s73
      %p80 = scmp.eq.s32.totalorder %s21, 1
      %p81 = por %p79, %p80
      %p82 = scmp.ne.s32.totalorder %s73, %s74
      %p83 = scmp.eq.s32.totalorder %s21, 0
      %p84 = por %p82, %p83
      %p85 = scmp.ne.s32.totalorder %s73, %s74
      %p86 = scmp.eq.s32.totalorder %s22, 1
      %p87 = por %p85, %p86
      %p89 = scmp.ne.s32.totalorder %s74, %s88
      %p90 = scmp.eq.s32.totalorder %s22, 0
      %p91 = por %p89, %p90
      %s93 = sadd.s32 %s92, 1
      %p96 = scmp.eq.s32.totalorder %s16, 1
      %p97 = scmp.ne.s32.totalorder %s92, %s94
      %p98 = scmp.eq.s32.totalorder %s16, 0
      %p99 = por %p97, %p98
      %p100 = scmp.ne.s32.totalorder %s92, %s94
      %p101 = scmp.eq.s32.totalorder %s21, 1
      %p102 = por %p100, %p101
      %p103 = scmp.ne.s32.totalorder %s94, %s95
      %p104 = scmp.eq.s32.totalorder %s21, 0
      %p105 = por %p103, %p104
      %p106 = scmp.ne.s32.totalorder %s94, %s95
      %p107 = scmp.eq.s32.totalorder %s22, 1
      %p108 = por %p106, %p107
      %p110 = scmp.ne.s32.totalorder %s95, %s109
      %p111 = scmp.eq.s32.totalorder %s22, 0
      %p112 = por %p110, %p111
      %s114 = sadd.s32 %s113, 1
      %p117 = scmp.eq.s32.totalorder %s16, 1
      %p118 = scmp.ne.s32.totalorder %s113, %s115
      %p119 = scmp.eq.s32.totalorder %s16, 0
      %p120 = por %p118, %p119
      %p121 = scmp.ne.s32.totalorder %s113, %s115
      %p122 = scmp.eq.s32.totalorder %s21, 1
      %p123 = por %p121, %p122
      %p124 = scmp.ne.s32.totalorder %s115, %s116
      %p125 = scmp.eq.s32.totalorder %s21, 0
      %p126 = por %p124, %p125
      %p127 = scmp.ne.s32.totalorder %s115, %s116
      %p128 = scmp.eq.s32.totalorder %s22, 1
      %p129 = por %p127, %p128
      %p131 = scmp.ne.s32.totalorder %s116, %s130
      %p132 = scmp.eq.s32.totalorder %s22, 0
      %p133 = por %p131, %p132
      %s135 = sadd.s32 %s134, 1
      %p138 = scmp.eq.s32.totalorder %s16, 1
      %p139 = scmp.ne.s32.totalorder %s134, %s136
      %p140 = scmp.eq.s32.totalorder %s16, 0
      %p141 = por %p139, %p140
      %p142 = scmp.ne.s32.totalorder %s134, %s136
      %p143 = scmp.eq.s32.totalorder %s21, 1
      %p144 = por %p142, %p143
      %p145 = scmp.ne.s32.totalorder %s136, %s137
      %p146 = scmp.eq.s32.totalorder %s21, 0
      %p147 = por %p145, %p146
      %p148 = scmp.ne.s32.totalorder %s136, %s137
      %p149 = scmp.eq.s32.totalorder %s22, 1
      %p150 = por %p148, %p149
      %p152 = scmp.ne.s32.totalorder %s137, %s151
      %p153 = scmp.eq.s32.totalorder %s22, 0
      %p154 = por %p152, %p153
      %s156 = sadd.s32 %s155, 1
      %p159 = scmp.eq.s32.totalorder %s16, 1
      %p160 = scmp.ne.s32.totalorder %s155, %s157
      %p161 = scmp.eq.s32.totalorder %s16, 0
      %p162 = por %p160, %p161
      %p163 = scmp.ne.s32.totalorder %s155, %s157
      %p164 = scmp.eq.s32.totalorder %s21, 1
      %p165 = por %p163, %p164
      %p166 = scmp.ne.s32.totalorder %s157, %s158
      %p167 = scmp.eq.s32.totalorder %s21, 0
      %p168 = por %p166, %p167
      %p169 = scmp.ne.s32.totalorder %s157, %s158
      %p170 = scmp.eq.s32.totalorder %s22, 1
      %p171 = por %p169, %p170
      %p173 = scmp.ne.s32.totalorder %s158, %s172
      %p174 = scmp.eq.s32.totalorder %s22, 0
      %p175 = por %p173, %p174
      %s176 = ssub.s32 %s16, %s23
      %p177 = scmp.eq.s32.totalorder %s176, 0
      %s179 = sadd.s32 %s178, 1
      %s180 = scalar_select %p177, %s178, %s179
      %p183 = pneg %p177
      %p184 = scmp.eq.s32.totalorder %s16, 1
      %p185 = por %p183, %p184
      %p186 = scmp.ne.s32.totalorder %s178, %s181
      %p187 = scmp.eq.s32.totalorder %s16, 0
      %p188 = por %p186, %p187
      %p189 = scmp.ne.s32.totalorder %s178, %s181
      %p190 = scmp.eq.s32.totalorder %s21, 1
      %p191 = por %p189, %p190
      %p192 = scmp.ne.s32.totalorder %s181, %s182
      %p193 = scmp.eq.s32.totalorder %s21, 0
      %p194 = por %p192, %p193
      %p195 = scmp.ne.s32.totalorder %s181, %s182
      %p196 = scmp.eq.s32.totalorder %s22, 1
      %p197 = por %p195, %p196
      %p199 = scmp.ne.s32.totalorder %s182, %s198
      %p200 = scmp.eq.s32.totalorder %s22, 0
      %p201 = por %p199, %p200
      %p202 = scmp.le.s32.totalorder 1, %s16
      %p203 = scmp.lt.s32.totalorder %s16, 3
      %p204 = pnand %p202, %p203
      %p205 = pneg %p204
      // Predicated region
      $region9: #{discrete_actor_probs_padded.1} parent=5 // pred_check
        _
      $region10: #{discrete_actor_probs_padded.1} parent=5 // pred_check_branch
        %207 = sbr.rel (%p204) target = $region12
      $region11: #{discrete_actor_probs_padded.1} parent=5 // pred_region
        %s208 = ssub.s32 %s16, 1
        // Predicated region
        $region13: #{discrete_actor_probs_padded.1} parent=11 // pred_check
          %p209 = pneg %p63
        $region14: #{discrete_actor_probs_padded.1} parent=11 // pred_check_branch
          %211 = sbr.rel (%p209) target = $region16
        $region15: #{discrete_actor_probs_padded.1} parent=11 // pred_region
          _
        $region16: #{discrete_actor_probs_padded.1} parent=11 // pred_fallthru
          _
        // Predicated region
        $region17: #{discrete_actor_probs_padded.1} parent=11 // pred_check
          %p212 = pneg %p84
        $region18: #{discrete_actor_probs_padded.1} parent=11 // pred_check_branch
          %214 = sbr.rel (%p212) target = $region20
        $region19: #{discrete_actor_probs_padded.1} parent=11 // pred_region
          _
        $region20: #{discrete_actor_probs_padded.1} parent=11 // pred_fallthru
          _
        // Predicated region
        $region21: #{discrete_actor_probs_padded.1} parent=11 // pred_check
          %p215 = pneg %p105
        $region22: #{discrete_actor_probs_padded.1} parent=11 // pred_check_branch
          %217 = sbr.rel (%p215) target = $region24
        $region23: #{discrete_actor_probs_padded.1} parent=11 // pred_region
          _
        $region24: #{discrete_actor_probs_padded.1} parent=11 // pred_fallthru
          _
        // Predicated region
        $region25: #{discrete_actor_probs_padded.1} parent=11 // pred_check
          %p218 = pneg %p126
        $region26: #{discrete_actor_probs_padded.1} parent=11 // pred_check_branch
          %220 = sbr.rel (%p218) target = $region28
        $region27: #{discrete_actor_probs_padded.1} parent=11 // pred_region
          _
        $region28: #{discrete_actor_probs_padded.1} parent=11 // pred_fallthru
          _
        // Predicated region
        $region29: #{discrete_actor_probs_padded.1} parent=11 // pred_check
          %p221 = pneg %p147
        $region30: #{discrete_actor_probs_padded.1} parent=11 // pred_check_branch
          %223 = sbr.rel (%p221) target = $region32
        $region31: #{discrete_actor_probs_padded.1} parent=11 // pred_region
          _
        $region32: #{discrete_actor_probs_padded.1} parent=11 // pred_fallthru
          _
        // Predicated region
        $region33: #{discrete_actor_probs_padded.1} parent=11 // pred_check
          %p224 = pneg %p168
        $region34: #{discrete_actor_probs_padded.1} parent=11 // pred_check_branch
          %226 = sbr.rel (%p224) target = $region36
        $region35: #{discrete_actor_probs_padded.1} parent=11 // pred_region
          _
        $region36: #{discrete_actor_probs_padded.1} parent=11 // pred_fallthru
          _
      $region12: #{discrete_actor_probs_padded.1} parent=5 // pred_fallthru
        _
      %p227 = scmp.lt.s32.totalorder %s16, 2
      // Predicated region
      $region37: #{discrete_actor_probs_padded.1} parent=5 // pred_check
        %p228 = pneg %p227
      $region38: #{discrete_actor_probs_padded.1} parent=5 // pred_check_branch
        %230 = sbr.rel (%p228) target = $region40
      $region39: #{discrete_actor_probs_padded.1} parent=5 // pred_region
        // Predicated region
        $region41: #{discrete_actor_probs_padded.1} parent=39 // pred_check
          %p231 = pneg %p36
        $region42: #{discrete_actor_probs_padded.1} parent=39 // pred_check_branch
          %233 = sbr.rel (%p231) target = $region44
        $region43: #{discrete_actor_probs_padded.1} parent=39 // pred_region
          %s234 = smul.u32 16, %s16
          %p235 = scmp.lt.s32.totalorder %s234, 31
          %s236 = scalar_select %p235, %s234, 31
          %s237 = smul.addr %s236, 4
          %s238 = scalar_lea.vmem %s0, %s237
          %s239 = smul.u32 16, %s16
        $region44: #{discrete_actor_probs_padded.1} parent=39 // pred_fallthru
          _
      $region40: #{discrete_actor_probs_padded.1} parent=5 // pred_fallthru
        _
      %p240 = scmp.le.s32.totalorder 1, %s16
      %p241 = scmp.lt.s32.totalorder %s16, 3
      %p242 = pnand %p240, %p241
      %p243 = pneg %p242
      // Predicated region
      $region45: #{discrete_actor_probs_padded.1} parent=5 // pred_check
        _
      $region46: #{discrete_actor_probs_padded.1} parent=5 // pred_check_branch
        %245 = sbr.rel (%p242) target = $region48
      $region47: #{discrete_actor_probs_padded.1} parent=5 // pred_region
        %s246 = ssub.s32 %s16, 1
        %s247 = smul.u32 16, %s21
        %p248 = scmp.lt.s32.totalorder %s247, 31
        %s249 = scalar_select %p248, %s247, 31
        %s250 = smul.addr %s249, 4
        %s251 = scalar_lea.vmem %s0, %s250
        %p252 = pneg %p42
        %p253 = pneg %p39
        %p254 = pneg %p63
        %p255 = pneg %p60
        %p256 = pneg %p84
        %p257 = pneg %p81
        %p258 = pneg %p105
        %p259 = pneg %p102
        %p260 = pneg %p126
        %p261 = pneg %p123
        %p262 = pneg %p147
        %p263 = pneg %p144
        %p264 = pneg %p168
        %p265 = pneg %p165
        %p266 = pneg %p194
        %p267 = pneg %p191
        %s268 = sand.u32 %s181, 1
        %s269 = scalar_lea.sflag [#allocation3], %s268
        %s270 = sand.u32 %s181, 1
        %s271 = smul.addr %s270, 128
        %s272 = scalar_lea.vmem [#allocation2], %s271
        %s273 = smul.u32 16, %s21
        %p274 = scmp.lt.s32.totalorder %s273, 31
        %s275 = scalar_select %p274, %s273, 31
        %s276 = smul.addr %s275, 4
        %s277 = scalar_lea.vmem %s0, %s276
        %s278 = smul.u32 16, %s21
        %s279 = smul.u32 16, %s21
        %v281 = vld [vmem:[%s277] sm:$0xf]
        %v282 = vld [vmem:[%s277 + $0x4] sm:$0xf]
        %v283 = vld [vmem:[%s277 + $0x8] sm:$0xf]
        %v284 = vld [vmem:[%s277 + $0xc] sm:$0xf]
        %v285 = vld [vmem:[%s277 + $0x10] sm:$0xf]
        %v286 = vld [vmem:[%s277 + $0x14] sm:$0xf]
        %v287 = vld [vmem:[%s277 + $0x18] sm:$0xf]
        %v288 = vld [vmem:[%s277 + $0x1c] sm:$0xf]
        %v289 = vld [vmem:[%s277 + $0x20] sm:$0xf]
        %v290 = vld [vmem:[%s277 + $0x24] sm:$0xf]
        %v291 = vld [vmem:[%s277 + $0x28] sm:$0xf]
        %v292 = vld [vmem:[%s277 + $0x2c] sm:$0xf]
        %v293 = vld [vmem:[%s277 + $0x30] sm:$0xf]
        %v294 = vld [vmem:[%s277 + $0x34] sm:$0xf]
        %v295 = vld [vmem:[%s277 + $0x38] sm:$0xf]
        %v296 = vld [vmem:[%s277 + $0x3c] sm:$0xf]
        %v297 = vld [vmem:[%s1] sm:$0xf]
        %v298 = vld [vmem:[%s1 + $0x4] sm:$0xf]
        %v299 = vld [vmem:[%s1 + $0x8] sm:$0xf]
        %v300 = vld [vmem:[%s1 + $0xc] sm:$0xf]
        %v301 = vld [vmem:[%s1 + $0x10] sm:$0xf]
        %v302 = vld [vmem:[%s1 + $0x14] sm:$0xf]
        %v303 = vld [vmem:[%s1 + $0x18] sm:$0xf]
        %v304 = vld [vmem:[%s1 + $0x1c] sm:$0xf]
        %v305 = vld [vmem:[%s1 + $0x20] sm:$0xf]
        %v306 = vld [vmem:[%s1 + $0x24] sm:$0xf]
        %v307 = vld [vmem:[%s1 + $0x28] sm:$0xf]
        %v308 = vld [vmem:[%s1 + $0x2c] sm:$0xf]
        %v309 = vld [vmem:[%s1 + $0x30] sm:$0xf]
        %v310 = vld [vmem:[%s1 + $0x34] sm:$0xf]
        %v311 = vld [vmem:[%s1 + $0x38] sm:$0xf]
        %v312 = vld [vmem:[%s1 + $0x3c] sm:$0xf]
        %v313 = vld [vmem:[%s2] sm:$0x1]
        %v315 = vlaneseq
        %v316 = vshrl.u32 %v315, 7
        %v317 = vsub.s32 0, %v316
        %v318 = vrot.slane %v313, %v317
        %v336 = vunpack.c.l.b16 %v281
        %v337 = vunpack.c.l.b16 %v282
        %v338 = vunpack.c.l.b16 %v283
        %v339 = vunpack.c.l.b16 %v284
        %v340 = vunpack.c.l.b16 %v285
        %v341 = vunpack.c.l.b16 %v286
        %v342 = vunpack.c.l.b16 %v287
        %v343 = vunpack.c.l.b16 %v288
        %v344 = vunpack.c.l.b16 %v289
        %v345 = vunpack.c.l.b16 %v290
        %v346 = vunpack.c.l.b16 %v291
        %v347 = vunpack.c.l.b16 %v292
        %v348 = vunpack.c.l.b16 %v293
        %v349 = vunpack.c.l.b16 %v294
        %v350 = vunpack.c.l.b16 %v295
        %v351 = vunpack.c.l.b16 %v296
        %v352 = vpack.c.b16 %v337, %v336
        %v353 = vpack.c.b16 %v339, %v338
        %v354 = vpack.c.b16 %v341, %v340
        %v355 = vpack.c.b16 %v343, %v342
        %v356 = vpack.c.b16 %v345, %v344
        %v357 = vpack.c.b16 %v347, %v346
        %v358 = vpack.c.b16 %v349, %v348
        %v359 = vpack.c.b16 %v351, %v350
        %v384 = vunpack.c.l.b16 %v297
        %v385 = vunpack.c.l.b16 %v298
        %v386 = vunpack.c.l.b16 %v299
        %v387 = vunpack.c.l.b16 %v300
        %v388 = vunpack.c.l.b16 %v301
        %v389 = vunpack.c.l.b16 %v302
        %v390 = vunpack.c.l.b16 %v303
        %v391 = vunpack.c.l.b16 %v304
        %v392 = vunpack.c.l.b16 %v305
        %v393 = vunpack.c.l.b16 %v306
        %v394 = vunpack.c.l.b16 %v307
        %v395 = vunpack.c.l.b16 %v308
        %v396 = vunpack.c.l.b16 %v309
        %v397 = vunpack.c.l.b16 %v310
        %v398 = vunpack.c.l.b16 %v311
        %v399 = vunpack.c.l.b16 %v312
        %v400 = vpack.c.b16 %v385, %v384
        %v401 = vpack.c.b16 %v387, %v386
        %v402 = vpack.c.b16 %v389, %v388
        %v403 = vpack.c.b16 %v391, %v390
        %v404 = vpack.c.b16 %v393, %v392
        %v405 = vpack.c.b16 %v395, %v394
        %v406 = vpack.c.b16 %v397, %v396
        %v407 = vpack.c.b16 %v399, %v398
        %416 = vmatprep.subr.bf16.mxu0 0
        %417 = vmatpush1.bf16.msra.mxu0 %v400
        %418 = vmatprep.subr.bf16.mxu0 0
        %419 = vmatpush1.bf16.msra.mxu0 %v401
        %420 = vmatprep.subr.bf16.mxu0 0
        %421 = vmatpush1.bf16.msra.mxu0 %v402
        %422 = vmatprep.subr.bf16.mxu0 0
        %423 = vmatpush1.bf16.msra.mxu0 %v403
        %424 = vmatprep.subr.bf16.mxu0 0
        %425 = vmatpush1.bf16.msra.mxu0 %v404
        %426 = vmatprep.subr.bf16.mxu0 0
        %427 = vmatpush1.bf16.msra.mxu0 %v405
        %428 = vmatprep.subr.bf16.mxu0 0
        %429 = vmatpush1.bf16.msra.mxu0 %v406
        %430 = vmatprep.subr.bf16.mxu0 0
        %431 = vmatpush1.bf16.msra.mxu0 %v407
        %432 = vmatprep.subr.bf16.mxu0 0
        %433 = vmatpush1.bf16.msra.mxu0 0
        %434 = vmatprep.subr.bf16.mxu0 0
        %435 = vmatpush1.bf16.msra.mxu0 0
        %436 = vmatprep.subr.bf16.mxu0 0
        %437 = vmatpush1.bf16.msra.mxu0 0
        %438 = vmatprep.subr.bf16.mxu0 0
        %439 = vmatpush1.bf16.msra.mxu0 0
        %440 = vmatprep.subr.bf16.mxu0 0
        %441 = vmatpush1.bf16.msra.mxu0 0
        %442 = vmatprep.subr.bf16.mxu0 0
        %443 = vmatpush1.bf16.msra.mxu0 0
        %444 = vmatprep.subr.bf16.mxu0 0
        %445 = vmatpush1.bf16.msra.mxu0 0
        %446 = vmatprep.subr.bf16.mxu0 0
        %447 = vmatpush1.bf16.msra.mxu0 0
        %448 = vmatprep.mubr.bf16.mxu0 0
        %449 = vmatmul.mubr.bf16.gmra.mrb[0].mxu0 %v352
        %v450 = vpop.f32.mrb[0].mxu0
        %v451 = vadd.f32 %v318, %v450
        %v452 = vpop.f32.mrb[0].mxu0
        %v453 = vpop.f32.mrb[0].mxu0
        %v454 = vadd.f32 %v318, %v453
        %v455 = vpop.f32.mrb[0].mxu0
        %456 = vmatprep.mubr.bf16.mxu0 0
        %457 = vmatmul.mubr.bf16.gmra.mrb[0].mxu0 %v353
        %v458 = vpop.f32.mrb[0].mxu0
        %v459 = vadd.f32 %v318, %v458
        %v460 = vpop.f32.mrb[0].mxu0
        %v461 = vpop.f32.mrb[0].mxu0
        %v462 = vadd.f32 %v318, %v461
        %v463 = vpop.f32.mrb[0].mxu0
        %464 = vmatprep.mubr.bf16.mxu0 0
        %465 = vmatmul.mubr.bf16.gmra.mrb[0].mxu0 %v354
        %v466 = vpop.f32.mrb[0].mxu0
        %v467 = vadd.f32 %v318, %v466
        %v468 = vpop.f32.mrb[0].mxu0
        %v469 = vpop.f32.mrb[0].mxu0
        %v470 = vadd.f32 %v318, %v469
        %v471 = vpop.f32.mrb[0].mxu0
        %472 = vmatprep.mubr.bf16.mxu0 0
        %473 = vmatmul.mubr.bf16.gmra.mrb[0].mxu0 %v355
        %v474 = vpop.f32.mrb[0].mxu0
        %v475 = vadd.f32 %v318, %v474
        %v476 = vpop.f32.mrb[0].mxu0
        %v477 = vpop.f32.mrb[0].mxu0
        %v478 = vadd.f32 %v318, %v477
        %v479 = vpop.f32.mrb[0].mxu0
        %480 = vmatprep.mubr.bf16.mxu0 0
        %481 = vmatmul.mubr.bf16.gmra.mrb[0].mxu0 %v356
        %v482 = vpop.f32.mrb[0].mxu0
        %v483 = vadd.f32 %v318, %v482
        %v484 = vpop.f32.mrb[0].mxu0
        %v485 = vpop.f32.mrb[0].mxu0
        %v486 = vadd.f32 %v318, %v485
        %v487 = vpop.f32.mrb[0].mxu0
        %488 = vmatprep.mubr.bf16.mxu0 0
        %489 = vmatmul.mubr.bf16.gmra.mrb[0].mxu0 %v357
        %v490 = vpop.f32.mrb[0].mxu0
        %v491 = vadd.f32 %v318, %v490
        %v492 = vpop.f32.mrb[0].mxu0
        %v493 = vpop.f32.mrb[0].mxu0
        %v494 = vadd.f32 %v318, %v493
        %v495 = vpop.f32.mrb[0].mxu0
        %496 = vmatprep.mubr.bf16.mxu0 0
        %497 = vmatmul.mubr.bf16.gmra.mrb[0].mxu0 %v358
        %v498 = vpop.f32.mrb[0].mxu0
        %v499 = vadd.f32 %v318, %v498
        %v500 = vpop.f32.mrb[0].mxu0
        %v501 = vpop.f32.mrb[0].mxu0
        %v502 = vadd.f32 %v318, %v501
        %v503 = vpop.f32.mrb[0].mxu0
        %504 = vmatprep.mubr.bf16.mxu0 0
        %505 = vmatmul.mubr.bf16.gmra.mrb[0].mxu0 %v359
        %v506 = vpop.f32.mrb[0].mxu0
        %v507 = vadd.f32 %v318, %v506
        %v508 = vpop.f32.mrb[0].mxu0
        %v509 = vpop.f32.mrb[0].mxu0
        %v510 = vadd.f32 %v318, %v509
        %v511 = vpop.f32.mrb[0].mxu0
        %512 = vdwg.mxu0
        %v513 = vtanh.pop %v451
        %v514 = vtanh.pop %v454
        %v515 = vtanh.pop %v459
        %v516 = vtanh.pop %v462
        %v517 = vtanh.pop %v467
        %v518 = vtanh.pop %v470
        %v519 = vtanh.pop %v475
        %v520 = vtanh.pop %v478
        %v521 = vtanh.pop %v483
        %v522 = vtanh.pop %v486
        %v523 = vtanh.pop %v491
        %v524 = vtanh.pop %v494
        %v525 = vtanh.pop %v499
        %v526 = vtanh.pop %v502
        %v527 = vtanh.pop %v507
        %v528 = vtanh.pop %v510
        %v529 = vpack.c.bf16 %v514, %v513
        %v530 = vpack.c.bf16 %v516, %v515
        %v531 = vpack.c.bf16 %v518, %v517
        %v532 = vpack.c.bf16 %v520, %v519
        %v533 = vpack.c.bf16 %v522, %v521
        %v534 = vpack.c.bf16 %v524, %v523
        %v535 = vpack.c.bf16 %v526, %v525
        %v536 = vpack.c.bf16 %v528, %v527
        %v537 = vld [vmem:[%s3] sm:$0xf]
        %v538 = vld [vmem:[%s3 + $0x4] sm:$0xf]
        %v539 = vld [vmem:[%s3 + $0x8] sm:$0xf]
        %v540 = vld [vmem:[%s3 + $0xc] sm:$0xf]
        %v541 = vld [vmem:[%s3 + $0x10] sm:$0xf]
        %v542 = vld [vmem:[%s3 + $0x14] sm:$0xf]
        %v543 = vld [vmem:[%s3 + $0x18] sm:$0xf]
        %v544 = vld [vmem:[%s3 + $0x1c] sm:$0xf]
        %v545 = vld [vmem:[%s3 + $0x20] sm:$0xf]
        %v546 = vld [vmem:[%s3 + $0x24] sm:$0xf]
        %v547 = vld [vmem:[%s3 + $0x28] sm:$0xf]
        %v548 = vld [vmem:[%s3 + $0x2c] sm:$0xf]
        %v549 = vld [vmem:[%s3 + $0x30] sm:$0xf]
        %v550 = vld [vmem:[%s3 + $0x34] sm:$0xf]
        %v551 = vld [vmem:[%s3 + $0x38] sm:$0xf]
        %v552 = vld [vmem:[%s3 + $0x3c] sm:$0xf]
        %v553 = vld [vmem:[%s4] sm:$0x1]
        %v555 = vlaneseq
        %v556 = vshrl.u32 %v555, 7
        %v557 = vsub.s32 0, %v556
        %v558 = vrot.slane %v553, %v557
        %v576 = vunpack.c.l.b16 %v537
        %v577 = vunpack.c.l.b16 %v538
        %v578 = vunpack.c.l.b16 %v539
        %v579 = vunpack.c.l.b16 %v540
        %v580 = vunpack.c.l.b16 %v541
        %v581 = vunpack.c.l.b16 %v542
        %v582 = vunpack.c.l.b16 %v543
        %v583 = vunpack.c.l.b16 %v544
        %v584 = vunpack.c.l.b16 %v545
        %v585 = vunpack.c.l.b16 %v546
        %v586 = vunpack.c.l.b16 %v547
        %v587 = vunpack.c.l.b16 %v548
        %v588 = vunpack.c.l.b16 %v549
        %v589 = vunpack.c.l.b16 %v550
        %v590 = vunpack.c.l.b16 %v551
        %v591 = vunpack.c.l.b16 %v552
        %v592 = vpack.c.b16 %v577, %v576
        %v593 = vpack.c.b16 %v579, %v578
        %v594 = vpack.c.b16 %v581, %v580
        %v595 = vpack.c.b16 %v583, %v582
        %v596 = vpack.c.b16 %v585, %v584
        %v597 = vpack.c.b16 %v587, %v586
        %v598 = vpack.c.b16 %v589, %v588
        %v599 = vpack.c.b16 %v591, %v590
        %608 = vmatprep.subr.bf16.mxu0 0
        %609 = vmatpush1.bf16.msra.mxu0 %v592
        %610 = vmatprep.subr.bf16.mxu0 0
        %611 = vmatpush1.bf16.msra.mxu0 %v593
        %612 = vmatprep.subr.bf16.mxu0 0
        %613 = vmatpush1.bf16.msra.mxu0 %v594
        %614 = vmatprep.subr.bf16.mxu0 0
        %615 = vmatpush1.bf16.msra.mxu0 %v595
        %616 = vmatprep.subr.bf16.mxu0 0
        %617 = vmatpush1.bf16.msra.mxu0 %v596
        %618 = vmatprep.subr.bf16.mxu0 0
        %619 = vmatpush1.bf16.msra.mxu0 %v597
        %620 = vmatprep.subr.bf16.mxu0 0
        %621 = vmatpush1.bf16.msra.mxu0 %v598
        %622 = vmatprep.subr.bf16.mxu0 0
        %623 = vmatpush1.bf16.msra.mxu0 %v599
        %624 = vmatprep.subr.bf16.mxu0 0
        %625 = vmatpush1.bf16.msra.mxu0 0
        %626 = vmatprep.subr.bf16.mxu0 0
        %627 = vmatpush1.bf16.msra.mxu0 0
        %628 = vmatprep.subr.bf16.mxu0 0
        %629 = vmatpush1.bf16.msra.mxu0 0
        %630 = vmatprep.subr.bf16.mxu0 0
        %631 = vmatpush1.bf16.msra.mxu0 0
        %632 = vmatprep.subr.bf16.mxu0 0
        %633 = vmatpush1.bf16.msra.mxu0 0
        %634 = vmatprep.subr.bf16.mxu0 0
        %635 = vmatpush1.bf16.msra.mxu0 0
        %636 = vmatprep.subr.bf16.mxu0 0
        %637 = vmatpush1.bf16.msra.mxu0 0
        %638 = vmatprep.subr.bf16.mxu0 0
        %639 = vmatpush1.bf16.msra.mxu0 0
        %640 = vmatprep.mubr.bf16.mxu0 0
        %641 = vmatmul.mubr.bf16.gmra.mrb[0].mxu0 %v529
        %v642 = vpop.f32.mrb[0].mxu0
        %v643 = vadd.f32 %v558, %v642
        %v644 = vpop.f32.mrb[0].mxu0
        %v645 = vpop.f32.mrb[0].mxu0
        %v646 = vadd.f32 %v558, %v645
        %v647 = vpop.f32.mrb[0].mxu0
        %648 = vmatprep.mubr.bf16.mxu0 0
        %649 = vmatmul.mubr.bf16.gmra.mrb[0].mxu0 %v530
        %v650 = vpop.f32.mrb[0].mxu0
        %v651 = vadd.f32 %v558, %v650
        %v652 = vpop.f32.mrb[0].mxu0
        %v653 = vpop.f32.mrb[0].mxu0
        %v654 = vadd.f32 %v558, %v653
        %v655 = vpop.f32.mrb[0].mxu0
        %656 = vmatprep.mubr.bf16.mxu0 0
        %657 = vmatmul.mubr.bf16.gmra.mrb[0].mxu0 %v531
        %v658 = vpop.f32.mrb[0].mxu0
        %v659 = vadd.f32 %v558, %v658
        %v660 = vpop.f32.mrb[0].mxu0
        %v661 = vpop.f32.mrb[0].mxu0
        %v662 = vadd.f32 %v558, %v661
        %v663 = vpop.f32.mrb[0].mxu0
        %664 = vmatprep.mubr.bf16.mxu0 0
        %665 = vmatmul.mubr.bf16.gmra.mrb[0].mxu0 %v532
        %v666 = vpop.f32.mrb[0].mxu0
        %v667 = vadd.f32 %v558, %v666
        %v668 = vpop.f32.mrb[0].mxu0
        %v669 = vpop.f32.mrb[0].mxu0
        %v670 = vadd.f32 %v558, %v669
        %v671 = vpop.f32.mrb[0].mxu0
        %672 = vmatprep.mubr.bf16.mxu0 0
        %673 = vmatmul.mubr.bf16.gmra.mrb[0].mxu0 %v533
        %v674 = vpop.f32.mrb[0].mxu0
        %v675 = vadd.f32 %v558, %v674
        %v676 = vpop.f32.mrb[0].mxu0
        %v677 = vpop.f32.mrb[0].mxu0
        %v678 = vadd.f32 %v558, %v677
        %v679 = vpop.f32.mrb[0].mxu0
        %680 = vmatprep.mubr.bf16.mxu0 0
        %681 = vmatmul.mubr.bf16.gmra.mrb[0].mxu0 %v534
        %v682 = vpop.f32.mrb[0].mxu0
        %v683 = vadd.f32 %v558, %v682
        %v684 = vpop.f32.mrb[0].mxu0
        %v685 = vpop.f32.mrb[0].mxu0
        %v686 = vadd.f32 %v558, %v685
        %v687 = vpop.f32.mrb[0].mxu0
        %688 = vmatprep.mubr.bf16.mxu0 0
        %689 = vmatmul.mubr.bf16.gmra.mrb[0].mxu0 %v535
        %v690 = vpop.f32.mrb[0].mxu0
        %v691 = vadd.f32 %v558, %v690
        %v692 = vpop.f32.mrb[0].mxu0
        %v693 = vpop.f32.mrb[0].mxu0
        %v694 = vadd.f32 %v558, %v693
        %v695 = vpop.f32.mrb[0].mxu0
        %696 = vmatprep.mubr.bf16.mxu0 0
        %697 = vmatmul.mubr.bf16.gmra.mrb[0].mxu0 %v536
        %v698 = vpop.f32.mrb[0].mxu0
        %v699 = vadd.f32 %v558, %v698
        %v700 = vpop.f32.mrb[0].mxu0
        %v701 = vpop.f32.mrb[0].mxu0
        %v702 = vadd.f32 %v558, %v701
        %v703 = vpop.f32.mrb[0].mxu0
        %704 = vdwg.mxu0
        %v705 = vtanh.pop %v643
        %v706 = vtanh.pop %v646
        %v707 = vtanh.pop %v651
        %v708 = vtanh.pop %v654
        %v709 = vtanh.pop %v659
        %v710 = vtanh.pop %v662
        %v711 = vtanh.pop %v667
        %v712 = vtanh.pop %v670
        %v713 = vtanh.pop %v675
        %v714 = vtanh.pop %v678
        %v715 = vtanh.pop %v683
        %v716 = vtanh.pop %v686
        %v717 = vtanh.pop %v691
        %v718 = vtanh.pop %v694
        %v719 = vtanh.pop %v699
        %v720 = vtanh.pop %v702
        %v721 = vpack.c.bf16 %v706, %v705
        %v722 = vpack.c.bf16 %v708, %v707
        %v723 = vpack.c.bf16 %v710, %v709
        %v724 = vpack.c.bf16 %v712, %v711
        %v725 = vpack.c.bf16 %v714, %v713
        %v726 = vpack.c.bf16 %v716, %v715
        %v727 = vpack.c.bf16 %v718, %v717
        %v728 = vpack.c.bf16 %v720, %v719
        %v729 = vld [vmem:[%s5] sm:$0xf]
        %v730 = vld [vmem:[%s5 + $0x4] sm:$0xf]
        %v731 = vld [vmem:[%s5 + $0x8] sm:$0xf]
        %v732 = vld [vmem:[%s5 + $0xc] sm:$0xf]
        %v733 = vld [vmem:[%s5 + $0x10] sm:$0xf]
        %v734 = vld [vmem:[%s5 + $0x14] sm:$0xf]
        %v735 = vld [vmem:[%s5 + $0x18] sm:$0xf]
        %v736 = vld [vmem:[%s5 + $0x1c] sm:$0xf]
        %v737 = vld [vmem:[%s5 + $0x20] sm:$0xf]
        %v738 = vld [vmem:[%s5 + $0x24] sm:$0xf]
        %v739 = vld [vmem:[%s5 + $0x28] sm:$0xf]
        %v740 = vld [vmem:[%s5 + $0x2c] sm:$0xf]
        %v741 = vld [vmem:[%s5 + $0x30] sm:$0xf]
        %v742 = vld [vmem:[%s5 + $0x34] sm:$0xf]
        %v743 = vld [vmem:[%s5 + $0x38] sm:$0xf]
        %v744 = vld [vmem:[%s5 + $0x3c] sm:$0xf]
        %v745 = vld [vmem:[%s6] sm:$0x1]
        %v747 = vlaneseq
        %v748 = vshrl.u32 %v747, 7
        %v749 = vsub.s32 0, %v748
        %v750 = vrot.slane %v745, %v749
        %v768 = vunpack.c.l.b16 %v729
        %v769 = vunpack.c.l.b16 %v730
        %v770 = vunpack.c.l.b16 %v731
        %v771 = vunpack.c.l.b16 %v732
        %v772 = vunpack.c.l.b16 %v733
        %v773 = vunpack.c.l.b16 %v734
        %v774 = vunpack.c.l.b16 %v735
        %v775 = vunpack.c.l.b16 %v736
        %v776 = vunpack.c.l.b16 %v737
        %v777 = vunpack.c.l.b16 %v738
        %v778 = vunpack.c.l.b16 %v739
        %v779 = vunpack.c.l.b16 %v740
        %v780 = vunpack.c.l.b16 %v741
        %v781 = vunpack.c.l.b16 %v742
        %v782 = vunpack.c.l.b16 %v743
        %v783 = vunpack.c.l.b16 %v744
        %v784 = vpack.c.b16 %v769, %v768
        %v785 = vpack.c.b16 %v771, %v770
        %v786 = vpack.c.b16 %v773, %v772
        %v787 = vpack.c.b16 %v775, %v774
        %v788 = vpack.c.b16 %v777, %v776
        %v789 = vpack.c.b16 %v779, %v778
        %v790 = vpack.c.b16 %v781, %v780
        %v791 = vpack.c.b16 %v783, %v782
        %800 = vmatprep.subr.bf16.mxu0 0
        %801 = vmatpush1.bf16.msra.mxu0 %v784
        %802 = vmatprep.subr.bf16.mxu0 0
        %803 = vmatpush1.bf16.msra.mxu0 %v785
        %804 = vmatprep.subr.bf16.mxu0 0
        %805 = vmatpush1.bf16.msra.mxu0 %v786
        %806 = vmatprep.subr.bf16.mxu0 0
        %807 = vmatpush1.bf16.msra.mxu0 %v787
        %808 = vmatprep.subr.bf16.mxu0 0
        %809 = vmatpush1.bf16.msra.mxu0 %v788
        %810 = vmatprep.subr.bf16.mxu0 0
        %811 = vmatpush1.bf16.msra.mxu0 %v789
        %812 = vmatprep.subr.bf16.mxu0 0
        %813 = vmatpush1.bf16.msra.mxu0 %v790
        %814 = vmatprep.subr.bf16.mxu0 0
        %815 = vmatpush1.bf16.msra.mxu0 %v791
        %816 = vmatprep.subr.bf16.mxu0 0
        %817 = vmatpush1.bf16.msra.mxu0 0
        %818 = vmatprep.subr.bf16.mxu0 0
        %819 = vmatpush1.bf16.msra.mxu0 0
        %820 = vmatprep.subr.bf16.mxu0 0
        %821 = vmatpush1.bf16.msra.mxu0 0
        %822 = vmatprep.subr.bf16.mxu0 0
        %823 = vmatpush1.bf16.msra.mxu0 0
        %824 = vmatprep.subr.bf16.mxu0 0
        %825 = vmatpush1.bf16.msra.mxu0 0
        %826 = vmatprep.subr.bf16.mxu0 0
        %827 = vmatpush1.bf16.msra.mxu0 0
        %828 = vmatprep.subr.bf16.mxu0 0
        %829 = vmatpush1.bf16.msra.mxu0 0
        %830 = vmatprep.subr.bf16.mxu0 0
        %831 = vmatpush1.bf16.msra.mxu0 0
        %832 = vmatprep.mubr.bf16.mxu0 0
        %833 = vmatmul.mubr.bf16.gmra.mrb[0].mxu0 %v721
        %v834 = vpop.f32.mrb[0].mxu0
        %v835 = vadd.f32 %v750, %v834
        %v836 = vpop.f32.mrb[0].mxu0
        %v837 = vpop.f32.mrb[0].mxu0
        %v838 = vadd.f32 %v750, %v837
        %v839 = vpop.f32.mrb[0].mxu0
        %840 = vmatprep.mubr.bf16.mxu0 0
        %841 = vmatmul.mubr.bf16.gmra.mrb[0].mxu0 %v722
        %v842 = vpop.f32.mrb[0].mxu0
        %v843 = vadd.f32 %v750, %v842
        %v844 = vpop.f32.mrb[0].mxu0
        %v845 = vpop.f32.mrb[0].mxu0
        %v846 = vadd.f32 %v750, %v845
        %v847 = vpop.f32.mrb[0].mxu0
        %848 = vmatprep.mubr.bf16.mxu0 0
        %849 = vmatmul.mubr.bf16.gmra.mrb[0].mxu0 %v723
        %v850 = vpop.f32.mrb[0].mxu0
        %v851 = vadd.f32 %v750, %v850
        %v852 = vpop.f32.mrb[0].mxu0
        %v853 = vpop.f32.mrb[0].mxu0
        %v854 = vadd.f32 %v750, %v853
        %v855 = vpop.f32.mrb[0].mxu0
        %856 = vmatprep.mubr.bf16.mxu0 0
        %857 = vmatmul.mubr.bf16.gmra.mrb[0].mxu0 %v724
        %v858 = vpop.f32.mrb[0].mxu0
        %v859 = vadd.f32 %v750, %v858
        %v860 = vpop.f32.mrb[0].mxu0
        %v861 = vpop.f32.mrb[0].mxu0
        %v862 = vadd.f32 %v750, %v861
        %v863 = vpop.f32.mrb[0].mxu0
        %864 = vmatprep.mubr.bf16.mxu0 0
        %865 = vmatmul.mubr.bf16.gmra.mrb[0].mxu0 %v725
        %v866 = vpop.f32.mrb[0].mxu0
        %v867 = vadd.f32 %v750, %v866
        %v868 = vpop.f32.mrb[0].mxu0
        %v869 = vpop.f32.mrb[0].mxu0
        %v870 = vadd.f32 %v750, %v869
        %v871 = vpop.f32.mrb[0].mxu0
        %872 = vmatprep.mubr.bf16.mxu0 0
        %873 = vmatmul.mubr.bf16.gmra.mrb[0].mxu0 %v726
        %v874 = vpop.f32.mrb[0].mxu0
        %v875 = vadd.f32 %v750, %v874
        %v876 = vpop.f32.mrb[0].mxu0
        %v877 = vpop.f32.mrb[0].mxu0
        %v878 = vadd.f32 %v750, %v877
        %v879 = vpop.f32.mrb[0].mxu0
        %880 = vmatprep.mubr.bf16.mxu0 0
        %881 = vmatmul.mubr.bf16.gmra.mrb[0].mxu0 %v727
        %v882 = vpop.f32.mrb[0].mxu0
        %v883 = vadd.f32 %v750, %v882
        %v884 = vpop.f32.mrb[0].mxu0
        %v885 = vpop.f32.mrb[0].mxu0
        %v886 = vadd.f32 %v750, %v885
        %v887 = vpop.f32.mrb[0].mxu0
        %888 = vmatprep.mubr.bf16.mxu0 0
        %889 = vmatmul.mubr.bf16.gmra.mrb[0].mxu0 %v728
        %v890 = vpop.f32.mrb[0].mxu0
        %v891 = vadd.f32 %v750, %v890
        %v892 = vpop.f32.mrb[0].mxu0
        %v893 = vpop.f32.mrb[0].mxu0
        %v894 = vadd.f32 %v750, %v893
        %v895 = vpop.f32.mrb[0].mxu0
        %896 = vdwg.mxu0
        %v897 = vlaneseq
        %v898 = vand.u32 %v897, 127
        %vm899 = vcmp.lt.s32.totalorder %v898, 6
        %v900 = vsel %vm899, %v835, -1e+30
        %v901 = vsel %vm899, %v838, -1e+30
        %v902 = vsel %vm899, %v843, -1e+30
        %v903 = vsel %vm899, %v846, -1e+30
        %v904 = vsel %vm899, %v851, -1e+30
        %v905 = vsel %vm899, %v854, -1e+30
        %v906 = vsel %vm899, %v859, -1e+30
        %v907 = vsel %vm899, %v862, -1e+30
        %v908 = vsel %vm899, %v867, -1e+30
        %v909 = vsel %vm899, %v870, -1e+30
        %v910 = vsel %vm899, %v875, -1e+30
        %v911 = vsel %vm899, %v878, -1e+30
        %v912 = vsel %vm899, %v883, -1e+30
        %v913 = vsel %vm899, %v886, -1e+30
        %v914 = vsel %vm899, %v891, -1e+30
        %v915 = vsel %vm899, %v894, -1e+30
        %916 = vmax.xlane.f32.xlu0 %v900
        %v917 = vpop.xlane.xlu0 %916
        %918 = vmax.xlane.f32.xlu0 %v901
        %v919 = vpop.xlane.xlu0 %918
        %920 = vmax.xlane.f32.xlu0 %v902
        %v921 = vpop.xlane.xlu0 %920
        %922 = vmax.xlane.f32.xlu0 %v903
        %v923 = vpop.xlane.xlu0 %922
        %924 = vmax.xlane.f32.xlu0 %v904
        %v925 = vpop.xlane.xlu0 %924
        %926 = vmax.xlane.f32.xlu0 %v905
        %v927 = vpop.xlane.xlu0 %926
        %928 = vmax.xlane.f32.xlu0 %v906
        %v929 = vpop.xlane.xlu0 %928
        %930 = vmax.xlane.f32.xlu0 %v907
        %v931 = vpop.xlane.xlu0 %930
        %932 = vmax.xlane.f32.xlu0 %v908
        %v933 = vpop.xlane.xlu0 %932
        %934 = vmax.xlane.f32.xlu0 %v909
        %v935 = vpop.xlane.xlu0 %934
        %936 = vmax.xlane.f32.xlu0 %v910
        %v937 = vpop.xlane.xlu0 %936
        %938 = vmax.xlane.f32.xlu0 %v911
        %v939 = vpop.xlane.xlu0 %938
        %940 = vmax.xlane.f32.xlu0 %v912
        %v941 = vpop.xlane.xlu0 %940
        %942 = vmax.xlane.f32.xlu0 %v913
        %v943 = vpop.xlane.xlu0 %942
        %944 = vmax.xlane.f32.xlu0 %v914
        %v945 = vpop.xlane.xlu0 %944
        %946 = vmax.xlane.f32.xlu0 %v915
        %v947 = vpop.xlane.xlu0 %946
        %v948 = vsub.f32 %v900, %v917
        %v949 = vsub.f32 %v901, %v919
        %v950 = vsub.f32 %v902, %v921
        %v951 = vsub.f32 %v903, %v923
        %v952 = vsub.f32 %v904, %v925
        %v953 = vsub.f32 %v905, %v927
        %v954 = vsub.f32 %v906, %v929
        %v955 = vsub.f32 %v907, %v931
        %v956 = vsub.f32 %v908, %v933
        %v957 = vsub.f32 %v909, %v935
        %v958 = vsub.f32 %v910, %v937
        %v959 = vsub.f32 %v911, %v939
        %v960 = vsub.f32 %v912, %v941
        %v961 = vsub.f32 %v913, %v943
        %v962 = vsub.f32 %v914, %v945
        %v963 = vsub.f32 %v915, %v947
        %v964 = vmul.f32 %v948, 1.442695
        %v965 = vpow.pop %v964
        %v966 = vmul.f32 %v949, 1.442695
        %v967 = vpow.pop %v966
        %v968 = vmul.f32 %v950, 1.442695
        %v969 = vpow.pop %v968
        %v970 = vmul.f32 %v951, 1.442695
        %v971 = vpow.pop %v970
        %v972 = vmul.f32 %v952, 1.442695
        %v973 = vpow.pop %v972
        %v974 = vmul.f32 %v953, 1.442695
        %v975 = vpow.pop %v974
        %v976 = vmul.f32 %v954, 1.442695
        %v977 = vpow.pop %v976
        %v978 = vmul.f32 %v955, 1.442695
        %v979 = vpow.pop %v978
        %v980 = vmul.f32 %v956, 1.442695
        %v981 = vpow.pop %v980
        %v982 = vmul.f32 %v957, 1.442695
        %v983 = vpow.pop %v982
        %v984 = vmul.f32 %v958, 1.442695
        %v985 = vpow.pop %v984
        %v986 = vmul.f32 %v959, 1.442695
        %v987 = vpow.pop %v986
        %v988 = vmul.f32 %v960, 1.442695
        %v989 = vpow.pop %v988
        %v990 = vmul.f32 %v961, 1.442695
        %v991 = vpow.pop %v990
        %v992 = vmul.f32 %v962, 1.442695
        %v993 = vpow.pop %v992
        %v994 = vmul.f32 %v963, 1.442695
        %v995 = vpow.pop %v994
        %v996 = vsel %vm899, %v965, 0.0
        %v997 = vsel %vm899, %v967, 0.0
        %v998 = vsel %vm899, %v969, 0.0
        %v999 = vsel %vm899, %v971, 0.0
        %v1000 = vsel %vm899, %v973, 0.0
        %v1001 = vsel %vm899, %v975, 0.0
        %v1002 = vsel %vm899, %v977, 0.0
        %v1003 = vsel %vm899, %v979, 0.0
        %v1004 = vsel %vm899, %v981, 0.0
        %v1005 = vsel %vm899, %v983, 0.0
        %v1006 = vsel %vm899, %v985, 0.0
        %v1007 = vsel %vm899, %v987, 0.0
        %v1008 = vsel %vm899, %v989, 0.0
        %v1009 = vsel %vm899, %v991, 0.0
        %v1010 = vsel %vm899, %v993, 0.0
        %v1011 = vsel %vm899, %v995, 0.0
        %1012 = vadd.xlane.f32.xlu0 %v996
        %v1013 = vpop.xlane.xlu0 %1012
        %1014 = vadd.xlane.f32.xlu0 %v997
        %v1015 = vpop.xlane.xlu0 %1014
        %1016 = vadd.xlane.f32.xlu0 %v998
        %v1017 = vpop.xlane.xlu0 %1016
        %1018 = vadd.xlane.f32.xlu0 %v999
        %v1019 = vpop.xlane.xlu0 %1018
        %1020 = vadd.xlane.f32.xlu0 %v1000
        %v1021 = vpop.xlane.xlu0 %1020
        %1022 = vadd.xlane.f32.xlu0 %v1001
        %v1023 = vpop.xlane.xlu0 %1022
        %1024 = vadd.xlane.f32.xlu0 %v1002
        %v1025 = vpop.xlane.xlu0 %1024
        %1026 = vadd.xlane.f32.xlu0 %v1003
        %v1027 = vpop.xlane.xlu0 %1026
        %1028 = vadd.xlane.f32.xlu0 %v1004
        %v1029 = vpop.xlane.xlu0 %1028
        %1030 = vadd.xlane.f32.xlu0 %v1005
        %v1031 = vpop.xlane.xlu0 %1030
        %1032 = vadd.xlane.f32.xlu0 %v1006
        %v1033 = vpop.xlane.xlu0 %1032
        %1034 = vadd.xlane.f32.xlu0 %v1007
        %v1035 = vpop.xlane.xlu0 %1034
        %1036 = vadd.xlane.f32.xlu0 %v1008
        %v1037 = vpop.xlane.xlu0 %1036
        %1038 = vadd.xlane.f32.xlu0 %v1009
        %v1039 = vpop.xlane.xlu0 %1038
        %1040 = vadd.xlane.f32.xlu0 %v1010
        %v1041 = vpop.xlane.xlu0 %1040
        %1042 = vadd.xlane.f32.xlu0 %v1011
        %v1043 = vpop.xlane.xlu0 %1042
        %v1044 = vrcp.pop %v1013
        %v1045 = vmul.f32 %v996, %v1044
        %v1046 = vrcp.pop %v1015
        %v1047 = vmul.f32 %v997, %v1046
        %v1048 = vrcp.pop %v1017
        %v1049 = vmul.f32 %v998, %v1048
        %v1050 = vrcp.pop %v1019
        %v1051 = vmul.f32 %v999, %v1050
        %v1052 = vrcp.pop %v1021
        %v1053 = vmul.f32 %v1000, %v1052
        %v1054 = vrcp.pop %v1023
        %v1055 = vmul.f32 %v1001, %v1054
        %v1056 = vrcp.pop %v1025
        %v1057 = vmul.f32 %v1002, %v1056
        %v1058 = vrcp.pop %v1027
        %v1059 = vmul.f32 %v1003, %v1058
        %v1060 = vrcp.pop %v1029
        %v1061 = vmul.f32 %v1004, %v1060
        %v1062 = vrcp.pop %v1031
        %v1063 = vmul.f32 %v1005, %v1062
        %v1064 = vrcp.pop %v1033
        %v1065 = vmul.f32 %v1006, %v1064
        %v1066 = vrcp.pop %v1035
        %v1067 = vmul.f32 %v1007, %v1066
        %v1068 = vrcp.pop %v1037
        %v1069 = vmul.f32 %v1008, %v1068
        %v1070 = vrcp.pop %v1039
        %v1071 = vmul.f32 %v1009, %v1070
        %v1072 = vrcp.pop %v1041
        %v1073 = vmul.f32 %v1010, %v1072
        %v1074 = vrcp.pop %v1043
        %v1075 = vmul.f32 %v1011, %v1074
        %1076 = vst [vmem:[%s272] sm:$0xff] %v1045
        %1077 = vst [vmem:[%s272 + $0x8] sm:$0xff] %v1047
        %1078 = vst [vmem:[%s272 + $0x10] sm:$0xff] %v1049
        %1079 = vst [vmem:[%s272 + $0x18] sm:$0xff] %v1051
        %1080 = vst [vmem:[%s272 + $0x20] sm:$0xff] %v1053
        %1081 = vst [vmem:[%s272 + $0x28] sm:$0xff] %v1055
        %1082 = vst [vmem:[%s272 + $0x30] sm:$0xff] %v1057
        %1083 = vst [vmem:[%s272 + $0x38] sm:$0xff] %v1059
        %1084 = vst [vmem:[%s272 + $0x40] sm:$0xff] %v1061
        %1085 = vst [vmem:[%s272 + $0x48] sm:$0xff] %v1063
        %1086 = vst [vmem:[%s272 + $0x50] sm:$0xff] %v1065
        %1087 = vst [vmem:[%s272 + $0x58] sm:$0xff] %v1067
        %1088 = vst [vmem:[%s272 + $0x60] sm:$0xff] %v1069
        %1089 = vst [vmem:[%s272 + $0x68] sm:$0xff] %v1071
        %1090 = vst [vmem:[%s272 + $0x70] sm:$0xff] %v1073
        %1091 = vst [vmem:[%s272 + $0x78] sm:$0xff] %v1075
        %s1092 = sand.u32 %s181, 1
        %s1093 = scalar_lea.sflag [#allocation3], %s1092
        %s1094 = sand.u32 %s181, 1
        %s1095 = smul.addr %s1094, 128
        %s1096 = scalar_lea.vmem [#allocation2], %s1095
        // Predicated region
        $region49: #{discrete_actor_probs_padded.1} parent=47 // pred_check
          %p1097 = pneg %p191
        $region50: #{discrete_actor_probs_padded.1} parent=47 // pred_check_branch
          %1099 = sbr.rel (%p1097) target = $region52
        $region51: #{discrete_actor_probs_padded.1} parent=47 // pred_region
          %s1100 = smul.u32 16, %s21
          %s1102 = ssub.s32 2048, 2048
          %1103 = vsyncadd %s1093, %s1102
          %s1104 = smul.addr %s1100, 128
          %s1105 = scalar_lea.hbm %s7, %s1104
          %s1106 = sshll.u32 %s1096, 4
          %s1107 = int_to_ptr.vmem [resolvable:$true] %s1106
          %1112 = dma.vmem_to_hbm [thread:$0]  %s1107, 2048, %s1105, %s1093, 128, 128, 8
        $region52: #{discrete_actor_probs_padded.1} parent=47 // pred_fallthru
          _
      $region48: #{discrete_actor_probs_padded.1} parent=5 // pred_fallthru
        _
      %p1113 = scmp.le.s32.totalorder 2, %s16
      // Predicated region
      $region53: #{discrete_actor_probs_padded.1} parent=5 // pred_check
        %p1114 = pneg %p1113
      $region54: #{discrete_actor_probs_padded.1} parent=5 // pred_check_branch
        %1116 = sbr.rel (%p1114) target = $region56
      $region55: #{discrete_actor_probs_padded.1} parent=5 // pred_region
        %s1117 = ssub.s32 %s16, 2
        // Predicated region
        $region57: #{discrete_actor_probs_padded.1} parent=55 // pred_check
          %p1118 = pneg %p197
        $region58: #{discrete_actor_probs_padded.1} parent=55 // pred_check_branch
          %1120 = sbr.rel (%p1118) target = $region60
        $region59: #{discrete_actor_probs_padded.1} parent=55 // pred_region
          %s1121 = sand.u32 %s182, 1
          %s1122 = scalar_lea.sflag [#allocation3], %s1121
          %s1123 = sand.u32 %s182, 1
          %s1124 = smul.addr %s1123, 128
          %s1125 = scalar_lea.vmem [#allocation2], %s1124
          %1126 = dma.done %s1122, 2048
        $region60: #{discrete_actor_probs_padded.1} parent=55 // pred_fallthru
          _
      $region56: #{discrete_actor_probs_padded.1} parent=5 // pred_fallthru
        _
    $region6: #{discrete_actor_probs_padded.1} parent=1 // loop_footer
      %s20 = sadd.s32 1, %s16
    $region7: #{discrete_actor_probs_padded.1} parent=1 // loop_footer_branch
      %15 = sbr.rel target = $region3
    $region8: #{discrete_actor_probs_padded.1} parent=1 // loop_exit
      _
    %1127 = vsyncpa [#allocation3], 1
    %s1128 = scalar_lea.sflag [#allocation3], 1
    %1129 = vsyncpa %s1128, 1

</llo_original>
